<compile_context>
chip_gen: v7x
topology: tpu7x:2x2x1
jax: 0.10.0
libtpu: 0.0.40
codegen_flags: <defaults>
</compile_context>

<pallas_src>
import jax
import jax.numpy as jnp
from jax.experimental import pallas as pl
from jax.experimental.pallas import tpu as pltpu


def _round_up(a, m):
    return (a + m - 1) // m * m


# --------------------------------------------------------------------------
# Kernel
# --------------------------------------------------------------------------
def _residual_linear_kernel(x_ref, w_ref, b_ref, o_ref, acc_ref):
    # Grid: (row tiles, K tiles); K is last and 'arbitrary'.
    #   x_ref  : (TM, H)  f32, fetched once per row tile (index constant in k)
    #   w_ref  : (TK, H)  bf16 contraction slab for this k step
    #   b_ref  : (1, H)   f32, resident
    #   o_ref  : (TM, H)  output tile, written at k == last
    #   acc_ref: (TM, H)  f32 accumulator scratch
    k = pl.program_id(1)
    tk = w_ref.shape[0]

    @pl.when(k == 0)
    def _init():
        # Fold the bias into the accumulator at init.
        acc_ref[...] = jnp.broadcast_to(b_ref[...], acc_ref.shape)

    # Only the (TM, TK) slice feeding the MXU this step is cast to bf16.
    col = pl.multiple_of(k * tk, 128)
    x_slab = x_ref[:, pl.ds(col, tk)]
    acc_ref[...] += jnp.dot(x_slab.astype(w_ref.dtype), w_ref[...],
                            preferred_element_type=jnp.float32)

    @pl.when(k == pl.num_programs(1) - 1)
    def _finalize():
        # f32 residual add + cast to the output dtype, once per row tile.
        o_ref[...] = (acc_ref[...] + x_ref[...].astype(jnp.float32)
                      ).astype(o_ref.dtype)


# --------------------------------------------------------------------------
# VMEM budgeting / tile selection (per-generation)
# --------------------------------------------------------------------------
def _vmem_budget():
    """Returns (physical VMEM per core, scoped limit to request), in bytes."""
    cap = 64 * 1024 * 1024  # conservative default (v7x per-TC)
    try:
        info = pltpu.get_tpu_info()
        cap = int(getattr(info, "vmem_capacity_bytes", cap)) or cap
    except Exception:
        pass
    # ~7/8 of physical with >= 8 MiB headroom for Mosaic internal scratch:
    #   v7x (64 MiB)   -> 56 MiB,   v5e/v6e (128 MiB) -> 112 MiB.
    limit = max(32 * 1024 * 1024, min(cap * 7 // 8, cap - 8 * 1024 * 1024))
    return cap, limit


def _vmem_estimate(tm, tk, hp):
    x_b = 2 * tm * hp * 4                        # x row tile, f32, 2 buffers
    o_b = 2 * tm * hp * 4                        # out row tile, f32, 2 buffers
    a_b = tm * hp * 4                            # f32 accumulator scratch
    w_b = (1 if tk == hp else 2) * tk * hp * 2   # bf16 weight slab(s)
    b_b = hp * 4                                 # bias (single-buffered)
    return x_b + o_b + a_b + w_b + b_b


def _choose_tiles(r, hp, budget, tm_pref):
    tm = min(tm_pref, _round_up(r, 8))
    tk_cands = [hp] + [t for t in (2048, 1024, 512, 256, 128)
                       if t < hp and hp % t == 0]
    while True:
        for tk in tk_cands:
            if _vmem_estimate(tm, tk, hp) <= budget:
                return tm, tk
        if tm <= 8:
            return 8, tk_cands[-1]               # best effort
        tm = max(8, _round_up(tm // 2, 8))


# --------------------------------------------------------------------------
# One-time parameter preparation (hoisted out of the per-call path)
# --------------------------------------------------------------------------
def prepare_residual_linear_params(w_t, b):
    """Pad H to a lane-dense multiple of 128 and cast W to bf16 for the MXU.

    w_t is the Linear weight already transposed to (H_in, H_out)."""
    h_in, h_out = w_t.shape
    assert h_in == h_out, "Residual(Linear) requires a square weight"
    hp = max(128, _round_up(h_in, 128))
    if hp != h_in:
        w_t = jnp.pad(w_t, ((0, hp - h_in), (0, hp - h_out)))
        b = jnp.pad(b, (0, hp - h_out))
    return w_t.astype(jnp.bfloat16), b.reshape(1, hp).astype(jnp.float32)


# --------------------------------------------------------------------------
# Wrapper
# --------------------------------------------------------------------------
def residual_linear(x, w_bf16, b2d, *, tm=None, tk=None, vmem_limit_bytes=None):
    """out = x + (x @ W + b), fused.

    x: (B, S, H) f32.  w_bf16 (Hp, Hp) bf16 and b2d (1, Hp) f32 come from
    prepare_residual_linear_params (Hp = H rounded up to a multiple of 128)."""
    B, S, H = x.shape
    Hp = w_bf16.shape[0]
    assert w_bf16.shape == (Hp, Hp) and Hp % 128 == 0 and Hp >= H
    assert b2d.shape == (1, Hp)

    cap, limit = _vmem_budget()
    if vmem_limit_bytes is not None:
        limit = int(vmem_limit_bytes)
    tm_pref = tm if tm is not None else (512 if cap >= 96 * 1024 * 1024 else 256)

    R = B * S
    x2d = x.reshape(R, H)

    TM, TK = _choose_tiles(R, Hp, limit - 4 * 1024 * 1024, tm_pref)
    if tk is not None:                            # explicit override (tuning/tests)
        assert tk % 128 == 0 and Hp % tk == 0
        TK = tk

    R_pad = _round_up(R, TM)
    if R_pad != R or Hp != H:
        x2d = jnp.pad(x2d, ((0, R_pad - R), (0, Hp - H)))

    n_i, n_k = R_pad // TM, Hp // TK

    cost = pl.CostEstimate(
        flops=2 * R_pad * Hp * Hp,
        transcendentals=0,
        bytes_accessed=(2 * R_pad * Hp * 4                         # x in + out
                        + Hp * Hp * 2 * (1 if n_k == 1 else n_i)   # W (re)streams
                        + Hp * 4),                                 # bias
    )

    def build(single_buffer_consts):
        const_mode = ({"pipeline_mode": pl.Buffered(1)}
                      if single_buffer_consts else {})
        # Resident W (n_k == 1, index constant) -> single buffer; streamed W
        # (index changes with k) keeps default double buffering.
        w_mode = const_mode if n_k == 1 else {}
        return pl.pallas_call(
            _residual_linear_kernel,
            out_shape=jax.ShapeDtypeStruct((R_pad, Hp), x.dtype),
            grid_spec=pltpu.PrefetchScalarGridSpec(
                num_scalar_prefetch=0,
                grid=(n_i, n_k),
                in_specs=[
                    pl.BlockSpec((TM, Hp), lambda i, k: (i, 0)),            # x
                    pl.BlockSpec((TK, Hp), lambda i, k: (k, 0), **w_mode),  # W
                    pl.BlockSpec((1, Hp), lambda i, k: (0, 0), **const_mode),  # b
                ],
                out_specs=pl.BlockSpec((TM, Hp), lambda i, k: (i, 0)),
                scratch_shapes=[pltpu.VMEM((TM, Hp), jnp.float32)],
            ),
            compiler_params=pltpu.CompilerParams(
                dimension_semantics=("parallel", "arbitrary"),
                vmem_limit_bytes=int(limit),
            ),
            cost_estimate=cost,
        )

    try:
        out2d = build(True)(x2d, w_bf16, b2d)
    except Exception:
        # Fallback for jax builds that reject pl.Buffered(1) on constant specs.
        out2d = build(False)(x2d, w_bf16, b2d)

    return out2d[:R, :H].reshape(B, S, H)


# --------------------------------------------------------------------------
# Self-test
# --------------------------------------------------------------------------
if __name__ == "__main__":
    def ref_bf16(x, w_t, b):
        # Mirrors the kernel's bf16-operand / f32-accumulate matmul.
        y = jnp.einsum("bsh,hk->bsk",
                       x.astype(jnp.bfloat16), w_t.astype(jnp.bfloat16),
                       preferred_element_type=jnp.float32)
        return x + y + b

    def ref_f32(x, w_t, b):
        return x + jnp.einsum("bsh,hk->bsk", x, w_t) + b

    # Case 1: module-sized smoke test (H=32 -> padded to 128, single K slab).
    # Case 2: H=256 with TK forced to 128 to exercise the K-tiled accumulator.
    for (B, S, H, tk) in [(2, 8, 32, None), (2, 8, 256, 128)]:
        kx, kw, kb = jax.random.split(jax.random.fold_in(jax.random.PRNGKey(0), H), 3)
        x = jax.random.normal(kx, (B, S, H), dtype=jnp.float32)
        bound = 1.0 / (H ** 0.5)
        # Linear params, stored pre-transposed (in, out) for x @ W.
        w_t = jax.random.uniform(kw, (H, H), jnp.float32, -bound, bound)
        b = jax.random.uniform(kb, (H,), jnp.float32, -bound, bound)

        w_bf16, b2d = prepare_residual_linear_params(w_t, b)   # one-time prep
        out = jax.block_until_ready(residual_linear(x, w_bf16, b2d, tk=tk))

        assert out.shape == (B, S, H)
        assert jnp.allclose(out, ref_bf16(x, w_t, b), atol=2e-3, rtol=2e-3), \
            f"mismatch vs bf16 reference (H={H})"
        # Loose tolerance vs the full-f32 reference accounts for bf16 MXU operands.
        assert jnp.allclose(out, ref_f32(x, w_t, b), atol=5e-2, rtol=5e-2), \
            f"mismatch vs f32 reference (H={H})"

    print("KERNEL_OK")
</pallas_src>

<mosaic_0001>
module attributes {stable_mosaic.version = 11 : i64} {
  func.func @_residual_linear_kernel(%arg0: i32, %arg1: i32, %arg2: memref<16x128xf32, #tpu.memory_space<vmem>>, %arg3: memref<128x128xbf16, #tpu.memory_space<vmem>>, %arg4: memref<1x128xf32, #tpu.memory_space<vmem>>, %arg5: memref<16x128xf32, #tpu.memory_space<vmem>>, %arg6: memref<16x128xf32, #tpu.memory_space<vmem>>) attributes {dimension_semantics = [#tpu.dimension_semantics<parallel>, #tpu.dimension_semantics<arbitrary>], iteration_bounds = array<i64: 1, 1>, scalar_prefetch = 0 : i64, scratch_operands = 1 : i64, tpu.core_type = #tpu.core_type<tc>, window_params = [{transform_indices = @transform_0, window_bounds = array<i64: 16, 128>}, {pipeline_mode = #tpu.pipeline_mode<synchronous>, transform_indices = @transform_1, window_bounds = array<i64: 128, 128>}, {pipeline_mode = #tpu.pipeline_mode<synchronous>, transform_indices = @transform_2, window_bounds = array<i64: 1, 128>}, {transform_indices = @transform_3, window_bounds = array<i64: 16, 128>}]} {
    %c0_i32 = arith.constant 0 : i32
    %0 = arith.cmpi eq, %arg1, %c0_i32 : i32
    %1 = arith.extui %0 : i1 to i32
    %c0_i32_0 = arith.constant 0 : i32
    %2 = arith.cmpi ne, %1, %c0_i32_0 : i32
    scf.if %2 {
      %c0_9 = arith.constant 0 : index
      %c0_10 = arith.constant 0 : index
      %16 = vector.load %arg4[%c0_9, %c0_10] : memref<1x128xf32, #tpu.memory_space<vmem>>, vector<1x128xf32>
      %17 = vector.shape_cast %16 : vector<1x128xf32> to vector<1x128xf32>
      %18 = vector.broadcast %17 : vector<1x128xf32> to vector<16x128xf32>
      %c0_11 = arith.constant 0 : index
      %c0_12 = arith.constant 0 : index
      %19 = vector.load %arg6[%c0_11, %c0_12] : memref<16x128xf32, #tpu.memory_space<vmem>>, vector<16x128xf32>
      tpu.vector_store %arg6[%c0_11, %c0_12], %18 {strides = array<i32>} : memref<16x128xf32, #tpu.memory_space<vmem>>, vector<16x128xf32>,
    } else {
    }
    %c128_i32 = arith.constant 128 : i32
    %3 = arith.muli %arg1, %c128_i32 : i32
    %4 = tpu.assume_multiple %3, 128 : i32
    %c0 = arith.constant 0 : index
    %5 = arith.index_cast %4 : i32 to index
    %6 = vector.load %arg2[%c0, %5] : memref<16x128xf32, #tpu.memory_space<vmem>>, vector<16x128xf32>
    %c0_1 = arith.constant 0 : index
    %c0_2 = arith.constant 0 : index
    %7 = vector.load %arg6[%c0_1, %c0_2] : memref<16x128xf32, #tpu.memory_space<vmem>>, vector<16x128xf32>
    %8 = arith.truncf %6 : vector<16x128xf32> to vector<16x128xbf16>
    %c0_3 = arith.constant 0 : index
    %c0_4 = arith.constant 0 : index
    %9 = vector.load %arg3[%c0_3, %c0_4] : memref<128x128xbf16, #tpu.memory_space<vmem>>, vector<128x128xbf16>
    %cst = arith.constant dense<0.000000e+00> : vector<16x128xf32>
    %10 = tpu.matmul %8, %9, %cst {dimension_numbers = #tpu.dot_dimension_numbers<[1], [0], [0], [1], [0, 0, 1, 1], [], []>} : vector<16x128xbf16>, vector<128x128xbf16>, vector<16x128xf32> -> vector<16x128xf32>
    %11 = arith.addf %7, %10 : vector<16x128xf32>
    %c0_5 = arith.constant 0 : index
    %c0_6 = arith.constant 0 : index
    %12 = vector.load %arg6[%c0_5, %c0_6] : memref<16x128xf32, #tpu.memory_space<vmem>>, vector<16x128xf32>
    tpu.vector_store %arg6[%c0_5, %c0_6], %11 {strides = array<i32>} : memref<16x128xf32, #tpu.memory_space<vmem>>, vector<16x128xf32>,
    %c0_i32_7 = arith.constant 0 : i32
    %13 = arith.cmpi eq, %arg1, %c0_i32_7 : i32
    %14 = arith.extui %13 : i1 to i32
    %c0_i32_8 = arith.constant 0 : i32
    %15 = arith.cmpi ne, %14, %c0_i32_8 : i32
    scf.if %15 {
      %c0_9 = arith.constant 0 : index
      %c0_10 = arith.constant 0 : index
      %16 = vector.load %arg6[%c0_9, %c0_10] : memref<16x128xf32, #tpu.memory_space<vmem>>, vector<16x128xf32>
      %c0_11 = arith.constant 0 : index
      %c0_12 = arith.constant 0 : index
      %17 = vector.load %arg2[%c0_11, %c0_12] : memref<16x128xf32, #tpu.memory_space<vmem>>, vector<16x128xf32>
      %18 = arith.addf %16, %17 : vector<16x128xf32>
      %c0_13 = arith.constant 0 : index
      %c0_14 = arith.constant 0 : index
      %19 = vector.load %arg5[%c0_13, %c0_14] : memref<16x128xf32, #tpu.memory_space<vmem>>, vector<16x128xf32>
      tpu.vector_store %arg5[%c0_13, %c0_14], %18 {strides = array<i32>} : memref<16x128xf32, #tpu.memory_space<vmem>>, vector<16x128xf32>,
    } else {
    }
    return
  }
  func.func @transform_0(%arg0: i32, %arg1: i32) -> (i32, i32) {
    %c0_i32 = arith.constant 0 : i32
    %c0_i32_0 = arith.constant 0 : i32
    return %arg0, %c0_i32 : i32, i32
  }
  func.func @transform_1(%arg0: i32, %arg1: i32) -> (i32, i32) {
    %c0_i32 = arith.constant 0 : i32
    %c0_i32_0 = arith.constant 0 : i32
    return %arg1, %c0_i32 : i32, i32
  }
  func.func @transform_2(%arg0: i32, %arg1: i32) -> (i32, i32) {
    %c0_i32 = arith.constant 0 : i32
    %c0_i32_0 = arith.constant 0 : i32
    %c0_i32_1 = arith.constant 0 : i32
    return %c0_i32, %c0_i32_0 : i32, i32
  }
  func.func @transform_3(%arg0: i32, %arg1: i32) -> (i32, i32) {
    %c0_i32 = arith.constant 0 : i32
    %c0_i32_0 = arith.constant 0 : i32
    return %arg0, %c0_i32 : i32, i32
  }
}

module attributes {stable_mosaic.version = 11 : i64} {
  func.func @_residual_linear_kernel(%arg0: i32, %arg1: i32, %arg2: memref<16x128xf32, #tpu.memory_space<vmem>>, %arg3: memref<128x128xbf16, #tpu.memory_space<vmem>>, %arg4: memref<1x128xf32, #tpu.memory_space<vmem>>, %arg5: memref<16x128xf32, #tpu.memory_space<vmem>>, %arg6: memref<16x128xf32, #tpu.memory_space<vmem>>) attributes {dimension_semantics = [#tpu.dimension_semantics<parallel>, #tpu.dimension_semantics<arbitrary>], iteration_bounds = array<i64: 1, 1>, scalar_prefetch = 0 : i64, scratch_operands = 1 : i64, tpu.core_type = #tpu.core_type<tc>, window_params = [{transform_indices = @transform_0, window_bounds = array<i64: 16, 128>}, {transform_indices = @transform_1, window_bounds = array<i64: 128, 128>}, {pipeline_mode = #tpu.pipeline_mode<synchronous>, transform_indices = @transform_2, window_bounds = array<i64: 1, 128>}, {transform_indices = @transform_3, window_bounds = array<i64: 16, 128>}]} {
    %c0_i32 = arith.constant 0 : i32
    %0 = arith.cmpi eq, %arg1, %c0_i32 : i32
    %1 = arith.extui %0 : i1 to i32
    %c0_i32_0 = arith.constant 0 : i32
    %2 = arith.cmpi ne, %1, %c0_i32_0 : i32
    scf.if %2 {
      %c0_9 = arith.constant 0 : index
      %c0_10 = arith.constant 0 : index
      %16 = vector.load %arg4[%c0_9, %c0_10] : memref<1x128xf32, #tpu.memory_space<vmem>>, vector<1x128xf32>
      %17 = vector.shape_cast %16 : vector<1x128xf32> to vector<1x128xf32>
      %18 = vector.broadcast %17 : vector<1x128xf32> to vector<16x128xf32>
      %c0_11 = arith.constant 0 : index
      %c0_12 = arith.constant 0 : index
      %19 = vector.load %arg6[%c0_11, %c0_12] : memref<16x128xf32, #tpu.memory_space<vmem>>, vector<16x128xf32>
      tpu.vector_store %arg6[%c0_11, %c0_12], %18 {strides = array<i32>} : memref<16x128xf32, #tpu.memory_space<vmem>>, vector<16x128xf32>,
    } else {
    }
    %c128_i32 = arith.constant 128 : i32
    %3 = arith.muli %arg1, %c128_i32 : i32
    %4 = tpu.assume_multiple %3, 128 : i32
    %c0 = arith.constant 0 : index
    %5 = arith.index_cast %4 : i32 to index
    %6 = vector.load %arg2[%c0, %5] : memref<16x128xf32, #tpu.memory_space<vmem>>, vector<16x128xf32>
    %c0_1 = arith.constant 0 : index
    %c0_2 = arith.constant 0 : index
    %7 = vector.load %arg6[%c0_1, %c0_2] : memref<16x128xf32, #tpu.memory_space<vmem>>, vector<16x128xf32>
    %8 = arith.truncf %6 : vector<16x128xf32> to vector<16x128xbf16>
    %c0_3 = arith.constant 0 : index
    %c0_4 = arith.constant 0 : index
    %9 = vector.load %arg3[%c0_3, %c0_4] : memref<128x128xbf16, #tpu.memory_space<vmem>>, vector<128x128xbf16>
    %cst = arith.constant dense<0.000000e+00> : vector<16x128xf32>
    %10 = tpu.matmul %8, %9, %cst {dimension_numbers = #tpu.dot_dimension_numbers<[1], [0], [0], [1], [0, 0, 1, 1], [], []>} : vector<16x128xbf16>, vector<128x128xbf16>, vector<16x128xf32> -> vector<16x128xf32>
    %11 = arith.addf %7, %10 : vector<16x128xf32>
    %c0_5 = arith.constant 0 : index
    %c0_6 = arith.constant 0 : index
    %12 = vector.load %arg6[%c0_5, %c0_6] : memref<16x128xf32, #tpu.memory_space<vmem>>, vector<16x128xf32>
    tpu.vector_store %arg6[%c0_5, %c0_6], %11 {strides = array<i32>} : memref<16x128xf32, #tpu.memory_space<vmem>>, vector<16x128xf32>,
    %c0_i32_7 = arith.constant 0 : i32
    %13 = arith.cmpi eq, %arg1, %c0_i32_7 : i32
    %14 = arith.extui %13 : i1 to i32
    %c0_i32_8 = arith.constant 0 : i32
    %15 = arith.cmpi ne, %14, %c0_i32_8 : i32
    scf.if %15 {
      %c0_9 = arith.constant 0 : index
      %c0_10 = arith.constant 0 : index
      %16 = vector.load %arg6[%c0_9, %c0_10] : memref<16x128xf32, #tpu.memory_space<vmem>>, vector<16x128xf32>
      %c0_11 = arith.constant 0 : index
      %c0_12 = arith.constant 0 : index
      %17 = vector.load %arg2[%c0_11, %c0_12] : memref<16x128xf32, #tpu.memory_space<vmem>>, vector<16x128xf32>
      %18 = arith.addf %16, %17 : vector<16x128xf32>
      %c0_13 = arith.constant 0 : index
      %c0_14 = arith.constant 0 : index
      %19 = vector.load %arg5[%c0_13, %c0_14] : memref<16x128xf32, #tpu.memory_space<vmem>>, vector<16x128xf32>
      tpu.vector_store %arg5[%c0_13, %c0_14], %18 {strides = array<i32>} : memref<16x128xf32, #tpu.memory_space<vmem>>, vector<16x128xf32>,
    } else {
    }
    return
  }
  func.func @transform_0(%arg0: i32, %arg1: i32) -> (i32, i32) {
    %c0_i32 = arith.constant 0 : i32
    %c0_i32_0 = arith.constant 0 : i32
    return %arg0, %c0_i32 : i32, i32
  }
  func.func @transform_1(%arg0: i32, %arg1: i32) -> (i32, i32) {
    %c0_i32 = arith.constant 0 : i32
    %c0_i32_0 = arith.constant 0 : i32
    return %arg1, %c0_i32 : i32, i32
  }
  func.func @transform_2(%arg0: i32, %arg1: i32) -> (i32, i32) {
    %c0_i32 = arith.constant 0 : i32
    %c0_i32_0 = arith.constant 0 : i32
    %c0_i32_1 = arith.constant 0 : i32
    return %c0_i32, %c0_i32_0 : i32, i32
  }
  func.func @transform_3(%arg0: i32, %arg1: i32) -> (i32, i32) {
    %c0_i32 = arith.constant 0 : i32
    %c0_i32_0 = arith.constant 0 : i32
    return %arg0, %c0_i32 : i32, i32
  }
}

</mosaic_0001>

<llo_original>
// kernel: tpu_custom_call.1
$region0: #{tpu_custom_call.1}
  #allocation0 [shape = 'u32[]', space=smem, size = 0x4, offset = 0x4, fixed_abs, tag = 'smem constant byte address 0x4 - core index']
  #allocation1 [shape = 'u32[144,128]{1,0:T(1,128)}', space=vmem, size = 0x12000, scoped, tag = 'internal scratch']
  #allocation2 [shape = 'f32[16,128]{1,0:T(8,128)}', space=vmem, size = 0x2000, scoped, tag = 'scratch operand']
  %s0 = inlined_call_operand.hbm [shape: f32[16,128], index: 0, kind: input, shape index: {}]
  %s1 = inlined_call_operand.hbm [shape: bf16[128,128], index: 1, kind: input, shape index: {}]
  %s2 = inlined_call_operand.vmem [shape: f32[1,128], index: 2, kind: input, shape index: {}]
  %s3 = inlined_call_operand.hbm [shape: f32[16,128], index: 3, kind: output, shape index: {}]
  %s4 = sld [smem:[#allocation0]]
  $region38: #{tpu_custom_call.1} parent=0
    _
  %s6 = ssub.s32 1, %s4
  %s7 = scalar_select 0, %s6, %s4
  $region1: #{tpu_custom_call.1} parent=0
    #allocation3 [shape = 'u8[8192]{0}', space=vmem, size = 0x2000, scoped, tag = 'input window, operand 0, single buffered']
    #allocation4 [shape = 's32[1]{0}', space=sflag, size = 0x4, scoped, tag = 'scoped memory for tpu_custom_call.1']
    #allocation5 [shape = 's32[1]{0}', space=sflag, size = 0x4, scoped, tag = 'scoped memory for tpu_custom_call.1']
    #allocation6 [shape = 'u8[32768]{0}', space=vmem, size = 0x8000, scoped, tag = 'input window, operand 1, single buffered']
    #allocation7 [shape = 's32[1]{0}', space=sflag, size = 0x4, scoped, tag = 'scoped memory for tpu_custom_call.1']
    #allocation8 [shape = 'u8[8192]{0}', space=vmem, size = 0x2000, scoped, tag = 'output window, operand 0, single buffered']
    %8 = vsyncpa [#allocation4], 0
    %9 = vsyncpa [#allocation7], 0
    %10 = vsyncpa [#allocation5], 0
    // Predicated region
    $region2: #{tpu_custom_call.1} parent=1 // pred_check
      _
    $region3: #{tpu_custom_call.1} parent=1 // pred_check_branch
      %12 = sbr.rel (0) target = $region5
    $region4: #{tpu_custom_call.1} parent=1 // pred_region
      %s14 = ssub.s32 256, 256
      %15 = vsyncadd [#allocation4], %s14
      %s16 = sshll.u32 [#allocation3], 4
      %s17 = int_to_ptr.vmem [resolvable:$true] %s16
      %22 = dma.hbm_to_vmem [thread:$0]  %s0, 256, %s17, [#allocation4], 128, 128, 8
    $region5: #{tpu_custom_call.1} parent=1 // pred_fallthru
      _
    // Predicated region
    $region6: #{tpu_custom_call.1} parent=1 // pred_check
      _
    $region7: #{tpu_custom_call.1} parent=1 // pred_check_branch
      %24 = sbr.rel (0) target = $region9
    $region8: #{tpu_custom_call.1} parent=1 // pred_region
      %s26 = ssub.s32 1024, 1024
      %27 = vsyncadd [#allocation7], %s26
      %s28 = sshll.u32 [#allocation6], 4
      %s29 = int_to_ptr.vmem [resolvable:$true] %s28
      %34 = dma.hbm_to_vmem [thread:$0]  %s1, 1024, %s29, [#allocation7], 64, 64, 4
    $region9: #{tpu_custom_call.1} parent=1 // pred_fallthru
      _
    // Predicated region
    $region10: #{tpu_custom_call.1} parent=1 // pred_check
      _
    $region11: #{tpu_custom_call.1} parent=1 // pred_check_branch
      %36 = sbr.rel (0) target = $region13
    $region12: #{tpu_custom_call.1} parent=1 // pred_region
      _
    $region13: #{tpu_custom_call.1} parent=1 // pred_fallthru
      _
    // Predicated region
    $region14: #{tpu_custom_call.1} parent=1 // pred_check
      _
    $region15: #{tpu_custom_call.1} parent=1 // pred_check_branch
      %38 = sbr.rel (0) target = $region17
    $region16: #{tpu_custom_call.1} parent=1 // pred_region
      %39 = dma.done [#allocation4], 256
    $region17: #{tpu_custom_call.1} parent=1 // pred_fallthru
      _
    // Predicated region
    $region18: #{tpu_custom_call.1} parent=1 // pred_check
      _
    $region19: #{tpu_custom_call.1} parent=1 // pred_check_branch
      %41 = sbr.rel (0) target = $region21
    $region20: #{tpu_custom_call.1} parent=1 // pred_region
      %42 = dma.done [#allocation7], 1024
    $region21: #{tpu_custom_call.1} parent=1 // pred_fallthru
      _
    %p44 = scmp.eq.s32.totalorder 0, 0
    // Predicated region
    $region22: #{tpu_custom_call.1} parent=1 // pred_check
      %p45 = pneg %p44
    $region23: #{tpu_custom_call.1} parent=1 // pred_check_branch
      %47 = sbr.rel (%p45) target = $region25
    $region24: #{tpu_custom_call.1} parent=1 // pred_region
      %v48 = vld [vmem:[%s2] sm:$0x1]
      %v50 = vlaneseq
      %v51 = vshrl.u32 %v50, 7
      %v52 = vsub.s32 0, %v51
      %v53 = vrot.slane %v48, %v52
      %55 = vst [vmem:[#allocation2] sm:$0xff] %v53
      %56 = vst [vmem:[#allocation2 + $0x8] sm:$0xff] %v53
    $region25: #{tpu_custom_call.1} parent=1 // pred_fallthru
      _
    %s57 = smul.u32 0, 128
    %s58 = sshra.s32 %s57, 7
    %s59 = sand.u32 %s57, 127
    %s60 = scalar_lea.vmem [#allocation3], %s58
    %v61 = vld [vmem:[%s60] sm:$0xff]
    %v62 = vld [vmem:[%s60 + $0x8] sm:$0xff]
    %v63 = vld [vmem:[#allocation2] sm:$0xff]
    %v64 = vld [vmem:[#allocation2 + $0x8] sm:$0xff]
    %v65 = vpack.c.bf16 %v62, %v61
    %v66 = vld [vmem:[#allocation6] sm:$0xf]
    %v67 = vld [vmem:[#allocation6 + $0x4] sm:$0xf]
    %v68 = vld [vmem:[#allocation6 + $0x8] sm:$0xf]
    %v69 = vld [vmem:[#allocation6 + $0xc] sm:$0xf]
    %v70 = vld [vmem:[#allocation6 + $0x10] sm:$0xf]
    %v71 = vld [vmem:[#allocation6 + $0x14] sm:$0xf]
    %v72 = vld [vmem:[#allocation6 + $0x18] sm:$0xf]
    %v73 = vld [vmem:[#allocation6 + $0x1c] sm:$0xf]
    %v74 = vld [vmem:[#allocation6 + $0x20] sm:$0xf]
    %v75 = vld [vmem:[#allocation6 + $0x24] sm:$0xf]
    %v76 = vld [vmem:[#allocation6 + $0x28] sm:$0xf]
    %v77 = vld [vmem:[#allocation6 + $0x2c] sm:$0xf]
    %v78 = vld [vmem:[#allocation6 + $0x30] sm:$0xf]
    %v79 = vld [vmem:[#allocation6 + $0x34] sm:$0xf]
    %v80 = vld [vmem:[#allocation6 + $0x38] sm:$0xf]
    %v81 = vld [vmem:[#allocation6 + $0x3c] sm:$0xf]
    %v98 = vunpack.c.l.b16 %v66
    %v99 = vunpack.c.l.b16 %v67
    %v100 = vunpack.c.l.b16 %v68
    %v101 = vunpack.c.l.b16 %v69
    %v102 = vunpack.c.l.b16 %v70
    %v103 = vunpack.c.l.b16 %v71
    %v104 = vunpack.c.l.b16 %v72
    %v105 = vunpack.c.l.b16 %v73
    %v106 = vunpack.c.l.b16 %v74
    %v107 = vunpack.c.l.b16 %v75
    %v108 = vunpack.c.l.b16 %v76
    %v109 = vunpack.c.l.b16 %v77
    %v110 = vunpack.c.l.b16 %v78
    %v111 = vunpack.c.l.b16 %v79
    %v112 = vunpack.c.l.b16 %v80
    %v113 = vunpack.c.l.b16 %v81
    %v114 = vpack.c.b16 %v99, %v98
    %v115 = vpack.c.b16 %v101, %v100
    %v116 = vpack.c.b16 %v103, %v102
    %v117 = vpack.c.b16 %v105, %v104
    %v118 = vpack.c.b16 %v107, %v106
    %v119 = vpack.c.b16 %v109, %v108
    %v120 = vpack.c.b16 %v111, %v110
    %v121 = vpack.c.b16 %v113, %v112
    %130 = vmatprep.subr.bf16.mxu0 0
    %131 = vmatpush1.bf16.msra.mxu0 %v114
    %132 = vmatprep.subr.bf16.mxu0 0
    %133 = vmatpush1.bf16.msra.mxu0 %v115
    %134 = vmatprep.subr.bf16.mxu0 0
    %135 = vmatpush1.bf16.msra.mxu0 %v116
    %136 = vmatprep.subr.bf16.mxu0 0
    %137 = vmatpush1.bf16.msra.mxu0 %v117
    %138 = vmatprep.subr.bf16.mxu0 0
    %139 = vmatpush1.bf16.msra.mxu0 %v118
    %140 = vmatprep.subr.bf16.mxu0 0
    %141 = vmatpush1.bf16.msra.mxu0 %v119
    %142 = vmatprep.subr.bf16.mxu0 0
    %143 = vmatpush1.bf16.msra.mxu0 %v120
    %144 = vmatprep.subr.bf16.mxu0 0
    %145 = vmatpush1.bf16.msra.mxu0 %v121
    %146 = vmatprep.subr.bf16.mxu0 0
    %147 = vmatpush1.bf16.msra.mxu0 0
    %148 = vmatprep.subr.bf16.mxu0 0
    %149 = vmatpush1.bf16.msra.mxu0 0
    %150 = vmatprep.subr.bf16.mxu0 0
    %151 = vmatpush1.bf16.msra.mxu0 0
    %152 = vmatprep.subr.bf16.mxu0 0
    %153 = vmatpush1.bf16.msra.mxu0 0
    %154 = vmatprep.subr.bf16.mxu0 0
    %155 = vmatpush1.bf16.msra.mxu0 0
    %156 = vmatprep.subr.bf16.mxu0 0
    %157 = vmatpush1.bf16.msra.mxu0 0
    %158 = vmatprep.subr.bf16.mxu0 0
    %159 = vmatpush1.bf16.msra.mxu0 0
    %160 = vmatprep.subr.bf16.mxu0 0
    %161 = vmatpush1.bf16.msra.mxu0 0
    %162 = vmatprep.mubr.bf16.mxu0 0
    %163 = vmatmul.mubr.bf16.gmra.mrb[0].mxu0 %v65
    %v164 = vpop.f32.mrb[0].mxu0
    %v165 = vadd.f32 0.0, %v164
    %v166 = vpop.f32.mrb[0].mxu0
    %v167 = vpop.f32.mrb[0].mxu0
    %v168 = vadd.f32 0.0, %v167
    %v169 = vpop.f32.mrb[0].mxu0
    %170 = vdwg.mxu0
    %v171 = vadd.f32 %v63, %v165
    %v172 = vadd.f32 %v64, %v168
    %173 = vst [vmem:[#allocation2] sm:$0xff] %v171
    %174 = vst [vmem:[#allocation2 + $0x8] sm:$0xff] %v172
    // Predicated region
    $region26: #{tpu_custom_call.1} parent=1 // pred_check
      %p175 = pneg %p44
    $region27: #{tpu_custom_call.1} parent=1 // pred_check_branch
      %177 = sbr.rel (%p175) target = $region29
    $region28: #{tpu_custom_call.1} parent=1 // pred_region
      %v178 = vld [vmem:[#allocation2] sm:$0xff]
      %v179 = vld [vmem:[#allocation2 + $0x8] sm:$0xff]
      %v180 = vld [vmem:[#allocation3] sm:$0xff]
      %v181 = vld [vmem:[#allocation3 + $0x8] sm:$0xff]
      %v182 = vadd.f32 %v178, %v180
      %v183 = vadd.f32 %v179, %v181
      %184 = vst [vmem:[#allocation8] sm:$0xff] %v182
      %185 = vst [vmem:[#allocation8 + $0x8] sm:$0xff] %v183
    $region29: #{tpu_custom_call.1} parent=1 // pred_fallthru
      _
    // Predicated region
    $region30: #{tpu_custom_call.1} parent=1 // pred_check
      _
    $region31: #{tpu_custom_call.1} parent=1 // pred_check_branch
      %187 = sbr.rel (0) target = $region33
    $region32: #{tpu_custom_call.1} parent=1 // pred_region
      %s189 = ssub.s32 256, 256
      %190 = vsyncadd [#allocation5], %s189
      %s191 = sshll.u32 [#allocation8], 4
      %s192 = int_to_ptr.vmem [resolvable:$true] %s191
      %197 = dma.vmem_to_hbm [thread:$0]  %s192, 256, %s3, [#allocation5], 128, 128, 8
    $region33: #{tpu_custom_call.1} parent=1 // pred_fallthru
      _
    // Predicated region
    $region34: #{tpu_custom_call.1} parent=1 // pred_check
      _
    $region35: #{tpu_custom_call.1} parent=1 // pred_check_branch
      %199 = sbr.rel (0) target = $region37
    $region36: #{tpu_custom_call.1} parent=1 // pred_region
      %200 = dma.done [#allocation5], 256
    $region37: #{tpu_custom_call.1} parent=1 // pred_fallthru
      _
    %201 = vsyncpa [#allocation4], 1
    %202 = vsyncpa [#allocation7], 1
    %203 = vsyncpa [#allocation5], 1

// kernel: tpu_custom_call.1
$region0: #{tpu_custom_call.1}
  #allocation0 [shape = 'u32[]', space=smem, size = 0x4, offset = 0x4, fixed_abs, tag = 'smem constant byte address 0x4 - core index']
  #allocation1 [shape = 'u32[144,128]{1,0:T(1,128)}', space=vmem, size = 0x12000, scoped, tag = 'internal scratch']
  #allocation2 [shape = 'f32[16,128]{1,0:T(8,128)}', space=vmem, size = 0x2000, scoped, tag = 'scratch operand']
  %s0 = inlined_call_operand.hbm [shape: f32[16,128], index: 0, kind: input, shape index: {}]
  %s1 = inlined_call_operand.hbm [shape: bf16[128,128], index: 1, kind: input, shape index: {}]
  %s2 = inlined_call_operand.vmem [shape: f32[1,128], index: 2, kind: input, shape index: {}]
  %s3 = inlined_call_operand.hbm [shape: f32[16,128], index: 3, kind: output, shape index: {}]
  %s4 = sld [smem:[#allocation0]]
  $region38: #{tpu_custom_call.1} parent=0
    _
  %s6 = ssub.s32 1, %s4
  %s7 = scalar_select 0, %s6, %s4
  $region1: #{tpu_custom_call.1} parent=0
    #allocation3 [shape = 'u8[8192]{0}', space=vmem, size = 0x2000, scoped, tag = 'input window, operand 0, single buffered']
    #allocation4 [shape = 's32[1]{0}', space=sflag, size = 0x4, scoped, tag = 'scoped memory for tpu_custom_call.1']
    #allocation5 [shape = 's32[1]{0}', space=sflag, size = 0x4, scoped, tag = 'scoped memory for tpu_custom_call.1']
    #allocation6 [shape = 'u8[32768]{0}', space=vmem, size = 0x8000, scoped, tag = 'input window, operand 1, single buffered']
    #allocation7 [shape = 's32[1]{0}', space=sflag, size = 0x4, scoped, tag = 'scoped memory for tpu_custom_call.1']
    #allocation8 [shape = 'u8[8192]{0}', space=vmem, size = 0x2000, scoped, tag = 'output window, operand 0, single buffered']
    %8 = vsyncpa [#allocation4], 0
    %9 = vsyncpa [#allocation7], 0
    %10 = vsyncpa [#allocation5], 0
    // Predicated region
    $region2: #{tpu_custom_call.1} parent=1 // pred_check
      _
    $region3: #{tpu_custom_call.1} parent=1 // pred_check_branch
      %12 = sbr.rel (0) target = $region5
    $region4: #{tpu_custom_call.1} parent=1 // pred_region
      %s14 = ssub.s32 256, 256
      %15 = vsyncadd [#allocation4], %s14
      %s16 = sshll.u32 [#allocation3], 4
      %s17 = int_to_ptr.vmem [resolvable:$true] %s16
      %22 = dma.hbm_to_vmem [thread:$0]  %s0, 256, %s17, [#allocation4], 128, 128, 8
    $region5: #{tpu_custom_call.1} parent=1 // pred_fallthru
      _
    // Predicated region
    $region6: #{tpu_custom_call.1} parent=1 // pred_check
      _
    $region7: #{tpu_custom_call.1} parent=1 // pred_check_branch
      %24 = sbr.rel (0) target = $region9
    $region8: #{tpu_custom_call.1} parent=1 // pred_region
      %s26 = ssub.s32 1024, 1024
      %27 = vsyncadd [#allocation7], %s26
      %s28 = sshll.u32 [#allocation6], 4
      %s29 = int_to_ptr.vmem [resolvable:$true] %s28
      %34 = dma.hbm_to_vmem [thread:$0]  %s1, 1024, %s29, [#allocation7], 64, 64, 4
    $region9: #{tpu_custom_call.1} parent=1 // pred_fallthru
      _
    // Predicated region
    $region10: #{tpu_custom_call.1} parent=1 // pred_check
      _
    $region11: #{tpu_custom_call.1} parent=1 // pred_check_branch
      %36 = sbr.rel (0) target = $region13
    $region12: #{tpu_custom_call.1} parent=1 // pred_region
      _
    $region13: #{tpu_custom_call.1} parent=1 // pred_fallthru
      _
    // Predicated region
    $region14: #{tpu_custom_call.1} parent=1 // pred_check
      _
    $region15: #{tpu_custom_call.1} parent=1 // pred_check_branch
      %38 = sbr.rel (0) target = $region17
    $region16: #{tpu_custom_call.1} parent=1 // pred_region
      %39 = dma.done [#allocation4], 256
    $region17: #{tpu_custom_call.1} parent=1 // pred_fallthru
      _
    // Predicated region
    $region18: #{tpu_custom_call.1} parent=1 // pred_check
      _
    $region19: #{tpu_custom_call.1} parent=1 // pred_check_branch
      %41 = sbr.rel (0) target = $region21
    $region20: #{tpu_custom_call.1} parent=1 // pred_region
      %42 = dma.done [#allocation7], 1024
    $region21: #{tpu_custom_call.1} parent=1 // pred_fallthru
      _
    %p44 = scmp.eq.s32.totalorder 0, 0
    // Predicated region
    $region22: #{tpu_custom_call.1} parent=1 // pred_check
      %p45 = pneg %p44
    $region23: #{tpu_custom_call.1} parent=1 // pred_check_branch
      %47 = sbr.rel (%p45) target = $region25
    $region24: #{tpu_custom_call.1} parent=1 // pred_region
      %v48 = vld [vmem:[%s2] sm:$0x1]
      %v50 = vlaneseq
      %v51 = vshrl.u32 %v50, 7
      %v52 = vsub.s32 0, %v51
      %v53 = vrot.slane %v48, %v52
      %55 = vst [vmem:[#allocation2] sm:$0xff] %v53
      %56 = vst [vmem:[#allocation2 + $0x8] sm:$0xff] %v53
    $region25: #{tpu_custom_call.1} parent=1 // pred_fallthru
      _
    %s57 = smul.u32 0, 128
    %s58 = sshra.s32 %s57, 7
    %s59 = sand.u32 %s57, 127
    %s60 = scalar_lea.vmem [#allocation3], %s58
    %v61 = vld [vmem:[%s60] sm:$0xff]
    %v62 = vld [vmem:[%s60 + $0x8] sm:$0xff]
    %v63 = vld [vmem:[#allocation2] sm:$0xff]
    %v64 = vld [vmem:[#allocation2 + $0x8] sm:$0xff]
    %v65 = vpack.c.bf16 %v62, %v61
    %v66 = vld [vmem:[#allocation6] sm:$0xf]
    %v67 = vld [vmem:[#allocation6 + $0x4] sm:$0xf]
    %v68 = vld [vmem:[#allocation6 + $0x8] sm:$0xf]
    %v69 = vld [vmem:[#allocation6 + $0xc] sm:$0xf]
    %v70 = vld [vmem:[#allocation6 + $0x10] sm:$0xf]
    %v71 = vld [vmem:[#allocation6 + $0x14] sm:$0xf]
    %v72 = vld [vmem:[#allocation6 + $0x18] sm:$0xf]
    %v73 = vld [vmem:[#allocation6 + $0x1c] sm:$0xf]
    %v74 = vld [vmem:[#allocation6 + $0x20] sm:$0xf]
    %v75 = vld [vmem:[#allocation6 + $0x24] sm:$0xf]
    %v76 = vld [vmem:[#allocation6 + $0x28] sm:$0xf]
    %v77 = vld [vmem:[#allocation6 + $0x2c] sm:$0xf]
    %v78 = vld [vmem:[#allocation6 + $0x30] sm:$0xf]
    %v79 = vld [vmem:[#allocation6 + $0x34] sm:$0xf]
    %v80 = vld [vmem:[#allocation6 + $0x38] sm:$0xf]
    %v81 = vld [vmem:[#allocation6 + $0x3c] sm:$0xf]
    %v98 = vunpack.c.l.b16 %v66
    %v99 = vunpack.c.l.b16 %v67
    %v100 = vunpack.c.l.b16 %v68
    %v101 = vunpack.c.l.b16 %v69
    %v102 = vunpack.c.l.b16 %v70
    %v103 = vunpack.c.l.b16 %v71
    %v104 = vunpack.c.l.b16 %v72
    %v105 = vunpack.c.l.b16 %v73
    %v106 = vunpack.c.l.b16 %v74
    %v107 = vunpack.c.l.b16 %v75
    %v108 = vunpack.c.l.b16 %v76
    %v109 = vunpack.c.l.b16 %v77
    %v110 = vunpack.c.l.b16 %v78
    %v111 = vunpack.c.l.b16 %v79
    %v112 = vunpack.c.l.b16 %v80
    %v113 = vunpack.c.l.b16 %v81
    %v114 = vpack.c.b16 %v99, %v98
    %v115 = vpack.c.b16 %v101, %v100
    %v116 = vpack.c.b16 %v103, %v102
    %v117 = vpack.c.b16 %v105, %v104
    %v118 = vpack.c.b16 %v107, %v106
    %v119 = vpack.c.b16 %v109, %v108
    %v120 = vpack.c.b16 %v111, %v110
    %v121 = vpack.c.b16 %v113, %v112
    %130 = vmatprep.subr.bf16.mxu0 0
    %131 = vmatpush1.bf16.msra.mxu0 %v114
    %132 = vmatprep.subr.bf16.mxu0 0
    %133 = vmatpush1.bf16.msra.mxu0 %v115
    %134 = vmatprep.subr.bf16.mxu0 0
    %135 = vmatpush1.bf16.msra.mxu0 %v116
    %136 = vmatprep.subr.bf16.mxu0 0
    %137 = vmatpush1.bf16.msra.mxu0 %v117
    %138 = vmatprep.subr.bf16.mxu0 0
    %139 = vmatpush1.bf16.msra.mxu0 %v118
    %140 = vmatprep.subr.bf16.mxu0 0
    %141 = vmatpush1.bf16.msra.mxu0 %v119
    %142 = vmatprep.subr.bf16.mxu0 0
    %143 = vmatpush1.bf16.msra.mxu0 %v120
    %144 = vmatprep.subr.bf16.mxu0 0
    %145 = vmatpush1.bf16.msra.mxu0 %v121
    %146 = vmatprep.subr.bf16.mxu0 0
    %147 = vmatpush1.bf16.msra.mxu0 0
    %148 = vmatprep.subr.bf16.mxu0 0
    %149 = vmatpush1.bf16.msra.mxu0 0
    %150 = vmatprep.subr.bf16.mxu0 0
    %151 = vmatpush1.bf16.msra.mxu0 0
    %152 = vmatprep.subr.bf16.mxu0 0
    %153 = vmatpush1.bf16.msra.mxu0 0
    %154 = vmatprep.subr.bf16.mxu0 0
    %155 = vmatpush1.bf16.msra.mxu0 0
    %156 = vmatprep.subr.bf16.mxu0 0
    %157 = vmatpush1.bf16.msra.mxu0 0
    %158 = vmatprep.subr.bf16.mxu0 0
    %159 = vmatpush1.bf16.msra.mxu0 0
    %160 = vmatprep.subr.bf16.mxu0 0
    %161 = vmatpush1.bf16.msra.mxu0 0
    %162 = vmatprep.mubr.bf16.mxu0 0
    %163 = vmatmul.mubr.bf16.gmra.mrb[0].mxu0 %v65
    %v164 = vpop.f32.mrb[0].mxu0
    %v165 = vadd.f32 0.0, %v164
    %v166 = vpop.f32.mrb[0].mxu0
    %v167 = vpop.f32.mrb[0].mxu0
    %v168 = vadd.f32 0.0, %v167
    %v169 = vpop.f32.mrb[0].mxu0
    %170 = vdwg.mxu0
    %v171 = vadd.f32 %v63, %v165
    %v172 = vadd.f32 %v64, %v168
    %173 = vst [vmem:[#allocation2] sm:$0xff] %v171
    %174 = vst [vmem:[#allocation2 + $0x8] sm:$0xff] %v172
    // Predicated region
    $region26: #{tpu_custom_call.1} parent=1 // pred_check
      %p175 = pneg %p44
    $region27: #{tpu_custom_call.1} parent=1 // pred_check_branch
      %177 = sbr.rel (%p175) target = $region29
    $region28: #{tpu_custom_call.1} parent=1 // pred_region
      %v178 = vld [vmem:[#allocation2] sm:$0xff]
      %v179 = vld [vmem:[#allocation2 + $0x8] sm:$0xff]
      %v180 = vld [vmem:[#allocation3] sm:$0xff]
      %v181 = vld [vmem:[#allocation3 + $0x8] sm:$0xff]
      %v182 = vadd.f32 %v178, %v180
      %v183 = vadd.f32 %v179, %v181
      %184 = vst [vmem:[#allocation8] sm:$0xff] %v182
      %185 = vst [vmem:[#allocation8 + $0x8] sm:$0xff] %v183
    $region29: #{tpu_custom_call.1} parent=1 // pred_fallthru
      _
    // Predicated region
    $region30: #{tpu_custom_call.1} parent=1 // pred_check
      _
    $region31: #{tpu_custom_call.1} parent=1 // pred_check_branch
      %187 = sbr.rel (0) target = $region33
    $region32: #{tpu_custom_call.1} parent=1 // pred_region
      %s189 = ssub.s32 256, 256
      %190 = vsyncadd [#allocation5], %s189
      %s191 = sshll.u32 [#allocation8], 4
      %s192 = int_to_ptr.vmem [resolvable:$true] %s191
      %197 = dma.vmem_to_hbm [thread:$0]  %s192, 256, %s3, [#allocation5], 128, 128, 8
    $region33: #{tpu_custom_call.1} parent=1 // pred_fallthru
      _
    // Predicated region
    $region34: #{tpu_custom_call.1} parent=1 // pred_check
      _
    $region35: #{tpu_custom_call.1} parent=1 // pred_check_branch
      %199 = sbr.rel (0) target = $region37
    $region36: #{tpu_custom_call.1} parent=1 // pred_region
      %200 = dma.done [#allocation5], 256
    $region37: #{tpu_custom_call.1} parent=1 // pred_fallthru
      _
    %201 = vsyncpa [#allocation4], 1
    %202 = vsyncpa [#allocation7], 1
    %203 = vsyncpa [#allocation5], 1

</llo_original>
